<compile_context>
chip_gen: v7x
topology: tpu7x:2x2x1
jax: 0.10.0
libtpu: 0.0.40
codegen_flags: <defaults>
</compile_context>

<pallas_src>
import functools

import jax
import jax.numpy as jnp
from jax.experimental import pallas as pl
from jax.experimental.pallas import tpu as pltpu

COMPUTE_DTYPE = jnp.bfloat16  # MXU-native on v6e/v7x; halves weight DMA bytes.
VMEM_LIMIT = 32 * 1024 * 1024


# ----------------------------------------------------------------------------
# One-time parameter packing (matmul-ready layouts, bf16 weights).
# ----------------------------------------------------------------------------
def pack_params(p, compute_dtype=COMPUTE_DTYPE):
    num_classes = p["cls_w"].shape[0]
    cin, hidden = p["ct_w"].shape[0], p["ct_w"].shape[1]

    # Box head: fuse cls + bbox into one (F, 5C) matmul.
    box_w = jnp.concatenate([p["cls_w"].T, p["bbox_w"].T], axis=1)
    box_b = jnp.concatenate([p["cls_b"], p["bbox_b"]])

    # Mask head, stage 1: ConvTranspose2d(k=2, s=2) == one matmul with
    # columns ordered (ki, kj, co).  Bias tiled in the same (q, co) order.
    ct_w = jnp.transpose(p["ct_w"], (0, 2, 3, 1)).reshape(cin, 4 * hidden)
    ct_b = jnp.tile(p["ct_b"], 4)

    # Mask head, stage 2: 1x1 conv applied per (ki, kj) sub-block as a single
    # block-diagonal matmul: (4*hidden, 4*C) = kron(I4, W_fcn^T).
    fcn_w = p["fcn_w"].reshape(num_classes, hidden).T          # (hidden, C)
    fcn_bd = jnp.kron(jnp.eye(4, dtype=fcn_w.dtype), fcn_w)    # (4H, 4C)
    fcn_b4 = jnp.tile(p["fcn_b"], 4)

    return {
        "num_classes": num_classes,
        "hidden": hidden,
        "box_w": box_w.astype(compute_dtype),
        "box_b": box_b.astype(jnp.float32).reshape(1, -1),
        "ct_w": ct_w.astype(compute_dtype),
        "ct_b": ct_b.astype(jnp.float32).reshape(1, -1),
        "fcn_w": fcn_bd.astype(compute_dtype),
        "fcn_b": fcn_b4.astype(jnp.float32).reshape(1, -1),
    }


# ----------------------------------------------------------------------------
# Kernel 1: tiled  out = relu?( x @ w + b )   (x cast to w.dtype for the MXU)
# ----------------------------------------------------------------------------
def _matmul_bias_kernel(x_ref, w_ref, b_ref, o_ref, *, apply_relu):
    x = x_ref[...].astype(w_ref.dtype)
    acc = jnp.dot(x, w_ref[...], preferred_element_type=jnp.float32)
    acc = acc + b_ref[...]                     # (1, N) broadcasts over rows
    if apply_relu:
        acc = jnp.maximum(acc, 0.0)
    o_ref[...] = acc.astype(o_ref.dtype)


def matmul_bias(x, w, b2d, *, relu=False, tm=256):
    """x: (M, K) f32, w: (K, N) bf16, b2d: (1, N) f32 -> (M, N) f32."""
    M, K = x.shape
    Kw, N = w.shape
    assert K == Kw, (K, Kw)
    return pl.pallas_call(
        functools.partial(_matmul_bias_kernel, apply_relu=relu),
        out_shape=jax.ShapeDtypeStruct((M, N), jnp.float32),
        grid=(pl.cdiv(M, tm),),                       # ragged last tile OK
        in_specs=[
            pl.BlockSpec((tm, K), lambda i: (i, 0)),  # rows tiled
            pl.BlockSpec((K, N), lambda i: (0, 0)),   # weights resident
            pl.BlockSpec((1, N), lambda i: (0, 0)),   # bias resident
        ],
        out_specs=pl.BlockSpec((tm, N), lambda i: (i, 0)),
        compiler_params=pltpu.CompilerParams(
            dimension_semantics=("parallel",),
            vmem_limit_bytes=VMEM_LIMIT,
        ),
    )(x, w, b2d)


# ----------------------------------------------------------------------------
# Kernel 2: fused mask head.
#   per row tile:  y = relu(x @ W_ct + b_ct)          (tm, 4*hidden)   in VMEM
#                  o = y @ blockdiag(W_fcn) + b_fcn   (tm, 4*C)        -> HBM
# The (tm, 4*hidden) intermediate never touches HBM.
# ----------------------------------------------------------------------------
def _mask_head_kernel(x_ref, wct_ref, bct_ref, wfcn_ref, bfcn_ref, o_ref):
    x = x_ref[...].astype(wct_ref.dtype)
    y = jnp.dot(x, wct_ref[...], preferred_element_type=jnp.float32)
    y = jnp.maximum(y + bct_ref[...], 0.0)
    logits = jnp.dot(y.astype(wfcn_ref.dtype), wfcn_ref[...],
                     preferred_element_type=jnp.float32)
    o_ref[...] = (logits + bfcn_ref[...]).astype(o_ref.dtype)


def maskrcnn_predictor(x_nchw, pp, *, tm=512):
    """x: (R, Cin, H, W) -> mask logits (R, num_classes, 2H, 2W)."""
    R, Cin, H, W = x_nchw.shape
    hidden = pp["hidden"]
    C = pp["num_classes"]
    M = R * H * W

    x_flat = jnp.transpose(x_nchw, (0, 2, 3, 1)).reshape(M, Cin)

    out = pl.pallas_call(
        _mask_head_kernel,
        out_shape=jax.ShapeDtypeStruct((M, 4 * C), jnp.float32),
        grid=(pl.cdiv(M, tm),),
        in_specs=[
            pl.BlockSpec((tm, Cin), lambda i: (i, 0)),          # activations
            pl.BlockSpec((Cin, 4 * hidden), lambda i: (0, 0)),  # W_ct
            pl.BlockSpec((1, 4 * hidden), lambda i: (0, 0)),    # b_ct (x4)
            pl.BlockSpec((4 * hidden, 4 * C), lambda i: (0, 0)),# blockdiag W_fcn
            pl.BlockSpec((1, 4 * C), lambda i: (0, 0)),         # b_fcn (x4)
        ],
        out_specs=pl.BlockSpec((tm, 4 * C), lambda i: (i, 0)),
        compiler_params=pltpu.CompilerParams(
            dimension_semantics=("parallel",),
            vmem_limit_bytes=VMEM_LIMIT,
        ),
    )(x_flat, pp["ct_w"], pp["ct_b"], pp["fcn_w"], pp["fcn_b"])

    # Output columns are ordered (ki, kj, c).  Spatial interleave done on the
    # C-wide logits (cheapest place), straight to NCHW.
    y = out.reshape(R, H, W, 2, 2, C)
    y = jnp.transpose(y, (0, 5, 1, 3, 2, 4)).reshape(R, C, 2 * H, 2 * W)
    return y


# ----------------------------------------------------------------------------
# FastRCNNPredictor: one fused matmul, then cheap column split.
# ----------------------------------------------------------------------------
def fastrcnn_predictor(x, pp, *, tm=256):
    C = pp["num_classes"]
    out = matmul_bias(x, pp["box_w"], pp["box_b"], relu=False, tm=tm)
    return out[:, :C], out[:, C:]


# ----------------------------------------------------------------------------
# Pure-jnp f32 reference (same math as the PyTorch heads, unfused).
# ----------------------------------------------------------------------------
def _ref_heads(box_feats, mask_feats, p):
    cls_ref = box_feats @ p["cls_w"].T + p["cls_b"]
    bbox_ref = box_feats @ p["bbox_w"].T + p["bbox_b"]

    R, Cin, H, W = mask_feats.shape
    hidden = p["ct_w"].shape[1]
    xf = jnp.transpose(mask_feats, (0, 2, 3, 1)).reshape(R * H * W, Cin)
    wm = jnp.transpose(p["ct_w"], (0, 2, 3, 1)).reshape(Cin, 4 * hidden)
    y = jnp.maximum(xf @ wm + jnp.tile(p["ct_b"], 4), 0.0)
    y = y.reshape(R, H, W, 2, 2, hidden).transpose(0, 1, 3, 2, 4, 5)
    y = y.reshape(R, 2 * H, 2 * W, hidden)
    C = p["fcn_w"].shape[0]
    m = y.reshape(-1, hidden) @ p["fcn_w"].reshape(C, hidden).T + p["fcn_b"]
    m = m.reshape(R, 2 * H, 2 * W, C).transpose(0, 3, 1, 2)
    return cls_ref, bbox_ref, m


# ----------------------------------------------------------------------------
if __name__ == "__main__":
    # Small, deterministic shapes (real model: in_features=1024,
    # in_features_mask=256, hidden_layer=256, mask RoI 14x14, C=num_classes).
    num_classes = 8
    in_features = 128        # box head feature dim
    in_features_mask = 32    # mask head input channels
    hidden_layer = 32        # 256 in the real module
    num_box_rois = 16
    num_mask_rois = 4
    roi_hw = 14

    key = jax.random.PRNGKey(0)
    ks = jax.random.split(key, 10)

    params = {
        # FastRCNNPredictor (PyTorch Linear layout: (out, in))
        "cls_w": 0.05 * jax.random.normal(ks[0], (num_classes, in_features), jnp.float32),
        "cls_b": 0.05 * jax.random.normal(ks[1], (num_classes,), jnp.float32),
        "bbox_w": 0.05 * jax.random.normal(ks[2], (num_classes * 4, in_features), jnp.float32),
        "bbox_b": 0.05 * jax.random.normal(ks[3], (num_classes * 4,), jnp.float32),
        # MaskRCNNPredictor (ConvTranspose2d weight layout: (in, out, kH, kW))
        "ct_w": 0.05 * jax.random.normal(ks[4], (in_features_mask, hidden_layer, 2, 2), jnp.float32),
        "ct_b": 0.05 * jax.random.normal(ks[5], (hidden_layer,), jnp.float32),
        # Conv2d 1x1 weight layout: (out, in, 1, 1)
        "fcn_w": 0.05 * jax.random.normal(ks[6], (num_classes, hidden_layer, 1, 1), jnp.float32),
        "fcn_b": 0.05 * jax.random.normal(ks[7], (num_classes,), jnp.float32),
    }

    # One-time weight packing (matmul-ready layout, bf16).
    pp = pack_params(params)

    # Head inputs (as produced inside roi_heads of the real model).
    box_features = jax.random.normal(ks[8], (num_box_rois, in_features), jnp.float32)
    mask_features = jax.random.normal(
        ks[9], (num_mask_rois, in_features_mask, roi_hw, roi_hw), jnp.float32)

    cls_logits, bbox_deltas = fastrcnn_predictor(box_features, pp)
    mask_logits = maskrcnn_predictor(mask_features, pp)

    jax.block_until_ready((cls_logits, bbox_deltas, mask_logits))

    # Shape checks (match torchvision head semantics).
    assert cls_logits.shape == (num_box_rois, num_classes)
    assert bbox_deltas.shape == (num_box_rois, num_classes * 4)
    assert mask_logits.shape == (num_mask_rois, num_classes, 2 * roi_hw, 2 * roi_hw)

    # Numerical check vs pure-jnp f32 reference (kernel uses bf16 operands,
    # f32 accumulation -> slightly relaxed tolerance).
    c_r, b_r, m_r = _ref_heads(box_features, mask_features, params)
    assert jnp.allclose(cls_logits, c_r, rtol=2e-2, atol=2e-2)
    assert jnp.allclose(bbox_deltas, b_r, rtol=2e-2, atol=2e-2)
    assert jnp.allclose(mask_logits, m_r, rtol=2e-2, atol=2e-2)

    print("KERNEL_OK")
</pallas_src>

<mosaic_0001>
module attributes {stable_mosaic.version = 11 : i64} {
  func.func @_matmul_bias_kernel(%arg0: i32, %arg1: memref<256x128xf32, #tpu.memory_space<vmem>>, %arg2: memref<128x40xbf16, #tpu.memory_space<vmem>>, %arg3: memref<1x40xf32, #tpu.memory_space<vmem>>, %arg4: memref<256x40xf32, #tpu.memory_space<vmem>>) attributes {dimension_semantics = [#tpu.dimension_semantics<parallel>], iteration_bounds = array<i64: 1>, scalar_prefetch = 0 : i64, scratch_operands = 0 : i64, tpu.core_type = #tpu.core_type<tc>, window_params = [{transform_indices = @transform_0, window_bounds = array<i64: 256, 128>}, {pipeline_mode = #tpu.pipeline_mode<synchronous>, transform_indices = @transform_1, window_bounds = array<i64: 128, 40>}, {pipeline_mode = #tpu.pipeline_mode<synchronous>, transform_indices = @transform_2, window_bounds = array<i64: 1, 40>}, {transform_indices = @transform_3, window_bounds = array<i64: 256, 40>}]} {
    %c0 = arith.constant 0 : index
    %c0_0 = arith.constant 0 : index
    %0 = vector.load %arg1[%c0, %c0_0] : memref<256x128xf32, #tpu.memory_space<vmem>>, vector<256x128xf32>
    %1 = arith.truncf %0 : vector<256x128xf32> to vector<256x128xbf16>
    %c0_1 = arith.constant 0 : index
    %c0_2 = arith.constant 0 : index
    %2 = vector.load %arg2[%c0_1, %c0_2] : memref<128x40xbf16, #tpu.memory_space<vmem>>, vector<128x40xbf16>
    %cst = arith.constant dense<0.000000e+00> : vector<256x40xf32>
    %3 = tpu.matmul %1, %2, %cst {dimension_numbers = #tpu.dot_dimension_numbers<[1], [0], [0], [1], [0, 0, 1, 1], [], []>} : vector<256x128xbf16>, vector<128x40xbf16>, vector<256x40xf32> -> vector<256x40xf32>
    %c0_3 = arith.constant 0 : index
    %c0_4 = arith.constant 0 : index
    %4 = vector.load %arg3[%c0_3, %c0_4] : memref<1x40xf32, #tpu.memory_space<vmem>>, vector<1x40xf32>
    %5 = vector.broadcast %4 : vector<1x40xf32> to vector<256x40xf32>
    %6 = arith.addf %3, %5 : vector<256x40xf32>
    %c0_5 = arith.constant 0 : index
    %c0_6 = arith.constant 0 : index
    %7 = vector.load %arg4[%c0_5, %c0_6] : memref<256x40xf32, #tpu.memory_space<vmem>>, vector<256x40xf32>
    tpu.vector_store %arg4[%c0_5, %c0_6], %6 {strides = array<i32>} : memref<256x40xf32, #tpu.memory_space<vmem>>, vector<256x40xf32>,
    return
  }
  func.func @transform_0(%arg0: i32) -> (i32, i32) {
    %c0_i32 = arith.constant 0 : i32
    %c0_i32_0 = arith.constant 0 : i32
    return %arg0, %c0_i32 : i32, i32
  }
  func.func @transform_1(%arg0: i32) -> (i32, i32) {
    %c0_i32 = arith.constant 0 : i32
    %c0_i32_0 = arith.constant 0 : i32
    %c0_i32_1 = arith.constant 0 : i32
    return %c0_i32, %c0_i32_0 : i32, i32
  }
  func.func @transform_2(%arg0: i32) -> (i32, i32) {
    %c0_i32 = arith.constant 0 : i32
    %c0_i32_0 = arith.constant 0 : i32
    %c0_i32_1 = arith.constant 0 : i32
    return %c0_i32, %c0_i32_0 : i32, i32
  }
  func.func @transform_3(%arg0: i32) -> (i32, i32) {
    %c0_i32 = arith.constant 0 : i32
    %c0_i32_0 = arith.constant 0 : i32
    return %arg0, %c0_i32 : i32, i32
  }
}

</mosaic_0001>

<llo_original>
// kernel: tpu_custom_call.1
$region0: #{tpu_custom_call.1}
  #allocation0 [shape = 'u32[]', space=smem, size = 0x4, offset = 0x4, fixed_abs, tag = 'smem constant byte address 0x4 - core index']
  #allocation1 [shape = 'u32[144,128]{1,0:T(1,128)}', space=vmem, size = 0x12000, scoped, tag = 'internal scratch']
  %s0 = inlined_call_operand.vmem [shape: f32[16,128], index: 0, kind: input, shape index: {}]
  %s1 = inlined_call_operand.vmem [shape: bf16[128,40], index: 1, kind: input, shape index: {}]
  %s2 = inlined_call_operand.vmem [shape: f32[1,40], index: 2, kind: input, shape index: {}]
  %s3 = inlined_call_operand.hbm [shape: f32[16,40], index: 3, kind: output, shape index: {}]
  %s4 = sld [smem:[#allocation0]]
  $region22: #{tpu_custom_call.1} parent=0
    _
  %s6 = ssub.s32 1, %s4
  %s7 = scalar_select 0, %s6, %s4
  $region1: #{tpu_custom_call.1} parent=0
    #allocation2 [shape = 'u8[131072]{0}', space=vmem, size = 0x20000, scoped, tag = 'output window, operand 0, single buffered']
    #allocation3 [shape = 's32[1]{0}', space=sflag, size = 0x4, scoped, tag = 'scoped memory for tpu_custom_call.1']
    %8 = vsyncpa [#allocation3], 0
    // Predicated region
    $region2: #{tpu_custom_call.1} parent=1 // pred_check
      _
    $region3: #{tpu_custom_call.1} parent=1 // pred_check_branch
      %10 = sbr.rel (0) target = $region5
    $region4: #{tpu_custom_call.1} parent=1 // pred_region
      _
    $region5: #{tpu_custom_call.1} parent=1 // pred_fallthru
      _
    // Predicated region
    $region6: #{tpu_custom_call.1} parent=1 // pred_check
      _
    $region7: #{tpu_custom_call.1} parent=1 // pred_check_branch
      %12 = sbr.rel (0) target = $region9
    $region8: #{tpu_custom_call.1} parent=1 // pred_region
      _
    $region9: #{tpu_custom_call.1} parent=1 // pred_fallthru
      _
    // Predicated region
    $region10: #{tpu_custom_call.1} parent=1 // pred_check
      _
    $region11: #{tpu_custom_call.1} parent=1 // pred_check_branch
      %14 = sbr.rel (0) target = $region13
    $region12: #{tpu_custom_call.1} parent=1 // pred_region
      _
    $region13: #{tpu_custom_call.1} parent=1 // pred_fallthru
      _
    %v16 = vld [vmem:[%s0] sm:$0xff]
    %v17 = vld [vmem:[%s0 + $0x8] sm:$0xff]
    %v18 = vld [vmem:[%s0 + $0x10] sm:$0xff]
    %v19 = vld [vmem:[%s0 + $0x18] sm:$0xff]
    %v20 = vld [vmem:[%s0 + $0x20] sm:$0xff]
    %v21 = vld [vmem:[%s0 + $0x28] sm:$0xff]
    %v22 = vld [vmem:[%s0 + $0x30] sm:$0xff]
    %v23 = vld [vmem:[%s0 + $0x38] sm:$0xff]
    %v24 = vld [vmem:[%s0 + $0x40] sm:$0xff]
    %v25 = vld [vmem:[%s0 + $0x48] sm:$0xff]
    %v26 = vld [vmem:[%s0 + $0x50] sm:$0xff]
    %v27 = vld [vmem:[%s0 + $0x58] sm:$0xff]
    %v28 = vld [vmem:[%s0 + $0x60] sm:$0xff]
    %v29 = vld [vmem:[%s0 + $0x68] sm:$0xff]
    %v30 = vld [vmem:[%s0 + $0x70] sm:$0xff]
    %v31 = vld [vmem:[%s0 + $0x78] sm:$0xff]
    %v32 = vld [vmem:[%s0 + $0x80] sm:$0xff]
    %v33 = vld [vmem:[%s0 + $0x88] sm:$0xff]
    %v34 = vld [vmem:[%s0 + $0x90] sm:$0xff]
    %v35 = vld [vmem:[%s0 + $0x98] sm:$0xff]
    %v36 = vld [vmem:[%s0 + $0xa0] sm:$0xff]
    %v37 = vld [vmem:[%s0 + $0xa8] sm:$0xff]
    %v38 = vld [vmem:[%s0 + $0xb0] sm:$0xff]
    %v39 = vld [vmem:[%s0 + $0xb8] sm:$0xff]
    %v40 = vld [vmem:[%s0 + $0xc0] sm:$0xff]
    %v41 = vld [vmem:[%s0 + $0xc8] sm:$0xff]
    %v42 = vld [vmem:[%s0 + $0xd0] sm:$0xff]
    %v43 = vld [vmem:[%s0 + $0xd8] sm:$0xff]
    %v44 = vld [vmem:[%s0 + $0xe0] sm:$0xff]
    %v45 = vld [vmem:[%s0 + $0xe8] sm:$0xff]
    %v46 = vld [vmem:[%s0 + $0xf0] sm:$0xff]
    %v47 = vld [vmem:[%s0 + $0xf8] sm:$0xff]
    %v48 = vpack.c.bf16 %v17, %v16
    %v49 = vpack.c.bf16 %v19, %v18
    %v50 = vpack.c.bf16 %v21, %v20
    %v51 = vpack.c.bf16 %v23, %v22
    %v52 = vpack.c.bf16 %v25, %v24
    %v53 = vpack.c.bf16 %v27, %v26
    %v54 = vpack.c.bf16 %v29, %v28
    %v55 = vpack.c.bf16 %v31, %v30
    %v56 = vpack.c.bf16 %v33, %v32
    %v57 = vpack.c.bf16 %v35, %v34
    %v58 = vpack.c.bf16 %v37, %v36
    %v59 = vpack.c.bf16 %v39, %v38
    %v60 = vpack.c.bf16 %v41, %v40
    %v61 = vpack.c.bf16 %v43, %v42
    %v62 = vpack.c.bf16 %v45, %v44
    %v63 = vpack.c.bf16 %v47, %v46
    %v64 = vld [vmem:[%s1] sm:$0xf]
    %v65 = vld [vmem:[%s1 + $0x4] sm:$0xf]
    %v66 = vld [vmem:[%s1 + $0x8] sm:$0xf]
    %v67 = vld [vmem:[%s1 + $0xc] sm:$0xf]
    %v68 = vld [vmem:[%s1 + $0x10] sm:$0xf]
    %v69 = vld [vmem:[%s1 + $0x14] sm:$0xf]
    %v70 = vld [vmem:[%s1 + $0x18] sm:$0xf]
    %v71 = vld [vmem:[%s1 + $0x1c] sm:$0xf]
    %v72 = vld [vmem:[%s1 + $0x20] sm:$0xf]
    %v73 = vld [vmem:[%s1 + $0x24] sm:$0xf]
    %v74 = vld [vmem:[%s1 + $0x28] sm:$0xf]
    %v75 = vld [vmem:[%s1 + $0x2c] sm:$0xf]
    %v76 = vld [vmem:[%s1 + $0x30] sm:$0xf]
    %v77 = vld [vmem:[%s1 + $0x34] sm:$0xf]
    %v78 = vld [vmem:[%s1 + $0x38] sm:$0xf]
    %v79 = vld [vmem:[%s1 + $0x3c] sm:$0xf]
    %v80 = vld [vmem:[%s2] sm:$0x1]
    %v82 = vlaneseq
    %v83 = vshrl.u32 %v82, 7
    %v84 = vsub.s32 0, %v83
    %v85 = vrot.slane %v80, %v84
    %v103 = vunpack.c.l.b16 %v64
    %v104 = vunpack.c.l.b16 %v65
    %v105 = vunpack.c.l.b16 %v66
    %v106 = vunpack.c.l.b16 %v67
    %v107 = vunpack.c.l.b16 %v68
    %v108 = vunpack.c.l.b16 %v69
    %v109 = vunpack.c.l.b16 %v70
    %v110 = vunpack.c.l.b16 %v71
    %v111 = vunpack.c.l.b16 %v72
    %v112 = vunpack.c.l.b16 %v73
    %v113 = vunpack.c.l.b16 %v74
    %v114 = vunpack.c.l.b16 %v75
    %v115 = vunpack.c.l.b16 %v76
    %v116 = vunpack.c.l.b16 %v77
    %v117 = vunpack.c.l.b16 %v78
    %v118 = vunpack.c.l.b16 %v79
    %v119 = vpack.c.b16 %v104, %v103
    %v120 = vpack.c.b16 %v106, %v105
    %v121 = vpack.c.b16 %v108, %v107
    %v122 = vpack.c.b16 %v110, %v109
    %v123 = vpack.c.b16 %v112, %v111
    %v124 = vpack.c.b16 %v114, %v113
    %v125 = vpack.c.b16 %v116, %v115
    %v126 = vpack.c.b16 %v118, %v117
    %135 = vmatprep.subr.bf16.mxu0 0
    %136 = vmatpush1.bf16.msra.mxu0 %v119
    %137 = vmatprep.subr.bf16.mxu0 0
    %138 = vmatpush1.bf16.msra.mxu0 %v120
    %139 = vmatprep.subr.bf16.mxu0 0
    %140 = vmatpush1.bf16.msra.mxu0 %v121
    %141 = vmatprep.subr.bf16.mxu0 0
    %142 = vmatpush1.bf16.msra.mxu0 %v122
    %143 = vmatprep.subr.bf16.mxu0 0
    %144 = vmatpush1.bf16.msra.mxu0 %v123
    %145 = vmatprep.subr.bf16.mxu0 0
    %146 = vmatpush1.bf16.msra.mxu0 %v124
    %147 = vmatprep.subr.bf16.mxu0 0
    %148 = vmatpush1.bf16.msra.mxu0 %v125
    %149 = vmatprep.subr.bf16.mxu0 0
    %150 = vmatpush1.bf16.msra.mxu0 %v126
    %151 = vmatprep.subr.bf16.mxu0 0
    %152 = vmatpush1.bf16.msra.mxu0 0
    %153 = vmatprep.subr.bf16.mxu0 0
    %154 = vmatpush1.bf16.msra.mxu0 0
    %155 = vmatprep.subr.bf16.mxu0 0
    %156 = vmatpush1.bf16.msra.mxu0 0
    %157 = vmatprep.subr.bf16.mxu0 0
    %158 = vmatpush1.bf16.msra.mxu0 0
    %159 = vmatprep.subr.bf16.mxu0 0
    %160 = vmatpush1.bf16.msra.mxu0 0
    %161 = vmatprep.subr.bf16.mxu0 0
    %162 = vmatpush1.bf16.msra.mxu0 0
    %163 = vmatprep.subr.bf16.mxu0 0
    %164 = vmatpush1.bf16.msra.mxu0 0
    %165 = vmatprep.subr.bf16.mxu0 0
    %166 = vmatpush1.bf16.msra.mxu0 0
    %167 = vmatprep.mubr.bf16.mxu0 0
    %168 = vmatmul.mubr.bf16.gmra.mrb[0].mxu0 %v48
    %v169 = vpop.f32.mrb[0].mxu0
    %v170 = vadd.f32 %v85, %v169
    %v171 = vpop.f32.mrb[0].mxu0
    %v172 = vpop.f32.mrb[0].mxu0
    %v173 = vadd.f32 %v85, %v172
    %v174 = vpop.f32.mrb[0].mxu0
    %175 = vmatprep.mubr.bf16.mxu0 0
    %176 = vmatmul.mubr.bf16.gmra.mrb[0].mxu0 %v49
    %v177 = vpop.f32.mrb[0].mxu0
    %v178 = vadd.f32 %v85, %v177
    %v179 = vpop.f32.mrb[0].mxu0
    %v180 = vpop.f32.mrb[0].mxu0
    %v181 = vadd.f32 %v85, %v180
    %v182 = vpop.f32.mrb[0].mxu0
    %183 = vmatprep.mubr.bf16.mxu0 0
    %184 = vmatmul.mubr.bf16.gmra.mrb[0].mxu0 %v50
    %v185 = vpop.f32.mrb[0].mxu0
    %v186 = vadd.f32 %v85, %v185
    %v187 = vpop.f32.mrb[0].mxu0
    %v188 = vpop.f32.mrb[0].mxu0
    %v189 = vadd.f32 %v85, %v188
    %v190 = vpop.f32.mrb[0].mxu0
    %191 = vmatprep.mubr.bf16.mxu0 0
    %192 = vmatmul.mubr.bf16.gmra.mrb[0].mxu0 %v51
    %v193 = vpop.f32.mrb[0].mxu0
    %v194 = vadd.f32 %v85, %v193
    %v195 = vpop.f32.mrb[0].mxu0
    %v196 = vpop.f32.mrb[0].mxu0
    %v197 = vadd.f32 %v85, %v196
    %v198 = vpop.f32.mrb[0].mxu0
    %199 = vmatprep.mubr.bf16.mxu0 0
    %200 = vmatmul.mubr.bf16.gmra.mrb[0].mxu0 %v52
    %v201 = vpop.f32.mrb[0].mxu0
    %v202 = vadd.f32 %v85, %v201
    %v203 = vpop.f32.mrb[0].mxu0
    %v204 = vpop.f32.mrb[0].mxu0
    %v205 = vadd.f32 %v85, %v204
    %v206 = vpop.f32.mrb[0].mxu0
    %207 = vmatprep.mubr.bf16.mxu0 0
    %208 = vmatmul.mubr.bf16.gmra.mrb[0].mxu0 %v53
    %v209 = vpop.f32.mrb[0].mxu0
    %v210 = vadd.f32 %v85, %v209
    %v211 = vpop.f32.mrb[0].mxu0
    %v212 = vpop.f32.mrb[0].mxu0
    %v213 = vadd.f32 %v85, %v212
    %v214 = vpop.f32.mrb[0].mxu0
    %215 = vmatprep.mubr.bf16.mxu0 0
    %216 = vmatmul.mubr.bf16.gmra.mrb[0].mxu0 %v54
    %v217 = vpop.f32.mrb[0].mxu0
    %v218 = vadd.f32 %v85, %v217
    %v219 = vpop.f32.mrb[0].mxu0
    %v220 = vpop.f32.mrb[0].mxu0
    %v221 = vadd.f32 %v85, %v220
    %v222 = vpop.f32.mrb[0].mxu0
    %223 = vmatprep.mubr.bf16.mxu0 0
    %224 = vmatmul.mubr.bf16.gmra.mrb[0].mxu0 %v55
    %v225 = vpop.f32.mrb[0].mxu0
    %v226 = vadd.f32 %v85, %v225
    %v227 = vpop.f32.mrb[0].mxu0
    %v228 = vpop.f32.mrb[0].mxu0
    %v229 = vadd.f32 %v85, %v228
    %v230 = vpop.f32.mrb[0].mxu0
    %231 = vmatprep.mubr.bf16.mxu0 0
    %232 = vmatmul.mubr.bf16.gmra.mrb[0].mxu0 %v56
    %v233 = vpop.f32.mrb[0].mxu0
    %v234 = vadd.f32 %v85, %v233
    %v235 = vpop.f32.mrb[0].mxu0
    %v236 = vpop.f32.mrb[0].mxu0
    %v237 = vadd.f32 %v85, %v236
    %v238 = vpop.f32.mrb[0].mxu0
    %239 = vmatprep.mubr.bf16.mxu0 0
    %240 = vmatmul.mubr.bf16.gmra.mrb[0].mxu0 %v57
    %v241 = vpop.f32.mrb[0].mxu0
    %v242 = vadd.f32 %v85, %v241
    %v243 = vpop.f32.mrb[0].mxu0
    %v244 = vpop.f32.mrb[0].mxu0
    %v245 = vadd.f32 %v85, %v244
    %v246 = vpop.f32.mrb[0].mxu0
    %247 = vmatprep.mubr.bf16.mxu0 0
    %248 = vmatmul.mubr.bf16.gmra.mrb[0].mxu0 %v58
    %v249 = vpop.f32.mrb[0].mxu0
    %v250 = vadd.f32 %v85, %v249
    %v251 = vpop.f32.mrb[0].mxu0
    %v252 = vpop.f32.mrb[0].mxu0
    %v253 = vadd.f32 %v85, %v252
    %v254 = vpop.f32.mrb[0].mxu0
    %255 = vmatprep.mubr.bf16.mxu0 0
    %256 = vmatmul.mubr.bf16.gmra.mrb[0].mxu0 %v59
    %v257 = vpop.f32.mrb[0].mxu0
    %v258 = vadd.f32 %v85, %v257
    %v259 = vpop.f32.mrb[0].mxu0
    %v260 = vpop.f32.mrb[0].mxu0
    %v261 = vadd.f32 %v85, %v260
    %v262 = vpop.f32.mrb[0].mxu0
    %263 = vmatprep.mubr.bf16.mxu0 0
    %264 = vmatmul.mubr.bf16.gmra.mrb[0].mxu0 %v60
    %v265 = vpop.f32.mrb[0].mxu0
    %v266 = vadd.f32 %v85, %v265
    %v267 = vpop.f32.mrb[0].mxu0
    %v268 = vpop.f32.mrb[0].mxu0
    %v269 = vadd.f32 %v85, %v268
    %v270 = vpop.f32.mrb[0].mxu0
    %271 = vmatprep.mubr.bf16.mxu0 0
    %272 = vmatmul.mubr.bf16.gmra.mrb[0].mxu0 %v61
    %v273 = vpop.f32.mrb[0].mxu0
    %v274 = vadd.f32 %v85, %v273
    %v275 = vpop.f32.mrb[0].mxu0
    %v276 = vpop.f32.mrb[0].mxu0
    %v277 = vadd.f32 %v85, %v276
    %v278 = vpop.f32.mrb[0].mxu0
    %279 = vmatprep.mubr.bf16.mxu0 0
    %280 = vmatmul.mubr.bf16.gmra.mrb[0].mxu0 %v62
    %v281 = vpop.f32.mrb[0].mxu0
    %v282 = vadd.f32 %v85, %v281
    %v283 = vpop.f32.mrb[0].mxu0
    %v284 = vpop.f32.mrb[0].mxu0
    %v285 = vadd.f32 %v85, %v284
    %v286 = vpop.f32.mrb[0].mxu0
    %287 = vmatprep.mubr.bf16.mxu0 0
    %288 = vmatmul.mubr.bf16.gmra.mrb[0].mxu0 %v63
    %v289 = vpop.f32.mrb[0].mxu0
    %v290 = vadd.f32 %v85, %v289
    %v291 = vpop.f32.mrb[0].mxu0
    %v292 = vpop.f32.mrb[0].mxu0
    %v293 = vadd.f32 %v85, %v292
    %v294 = vpop.f32.mrb[0].mxu0
    %295 = vdwg.mxu0
    %vm296 = vcmask 326656
    %297 = vst.msk [vmem:[#allocation2] sm:$0xff] %vm296, %v170
    %298 = vst.msk [vmem:[#allocation2 + $0x8] sm:$0xff] %vm296, %v173
    %299 = vst.msk [vmem:[#allocation2 + $0x10] sm:$0xff] %vm296, %v178
    %300 = vst.msk [vmem:[#allocation2 + $0x18] sm:$0xff] %vm296, %v181
    %301 = vst.msk [vmem:[#allocation2 + $0x20] sm:$0xff] %vm296, %v186
    %302 = vst.msk [vmem:[#allocation2 + $0x28] sm:$0xff] %vm296, %v189
    %303 = vst.msk [vmem:[#allocation2 + $0x30] sm:$0xff] %vm296, %v194
    %304 = vst.msk [vmem:[#allocation2 + $0x38] sm:$0xff] %vm296, %v197
    %305 = vst.msk [vmem:[#allocation2 + $0x40] sm:$0xff] %vm296, %v202
    %306 = vst.msk [vmem:[#allocation2 + $0x48] sm:$0xff] %vm296, %v205
    %307 = vst.msk [vmem:[#allocation2 + $0x50] sm:$0xff] %vm296, %v210
    %308 = vst.msk [vmem:[#allocation2 + $0x58] sm:$0xff] %vm296, %v213
    %309 = vst.msk [vmem:[#allocation2 + $0x60] sm:$0xff] %vm296, %v218
    %310 = vst.msk [vmem:[#allocation2 + $0x68] sm:$0xff] %vm296, %v221
    %311 = vst.msk [vmem:[#allocation2 + $0x70] sm:$0xff] %vm296, %v226
    %312 = vst.msk [vmem:[#allocation2 + $0x78] sm:$0xff] %vm296, %v229
    %313 = vst.msk [vmem:[#allocation2 + $0x80] sm:$0xff] %vm296, %v234
    %314 = vst.msk [vmem:[#allocation2 + $0x88] sm:$0xff] %vm296, %v237
    %315 = vst.msk [vmem:[#allocation2 + $0x90] sm:$0xff] %vm296, %v242
    %316 = vst.msk [vmem:[#allocation2 + $0x98] sm:$0xff] %vm296, %v245
    %317 = vst.msk [vmem:[#allocation2 + $0xa0] sm:$0xff] %vm296, %v250
    %318 = vst.msk [vmem:[#allocation2 + $0xa8] sm:$0xff] %vm296, %v253
    %319 = vst.msk [vmem:[#allocation2 + $0xb0] sm:$0xff] %vm296, %v258
    %320 = vst.msk [vmem:[#allocation2 + $0xb8] sm:$0xff] %vm296, %v261
    %321 = vst.msk [vmem:[#allocation2 + $0xc0] sm:$0xff] %vm296, %v266
    %322 = vst.msk [vmem:[#allocation2 + $0xc8] sm:$0xff] %vm296, %v269
    %323 = vst.msk [vmem:[#allocation2 + $0xd0] sm:$0xff] %vm296, %v274
    %324 = vst.msk [vmem:[#allocation2 + $0xd8] sm:$0xff] %vm296, %v277
    %325 = vst.msk [vmem:[#allocation2 + $0xe0] sm:$0xff] %vm296, %v282
    %326 = vst.msk [vmem:[#allocation2 + $0xe8] sm:$0xff] %vm296, %v285
    %327 = vst.msk [vmem:[#allocation2 + $0xf0] sm:$0xff] %vm296, %v290
    %328 = vst.msk [vmem:[#allocation2 + $0xf8] sm:$0xff] %vm296, %v293
    // Predicated region
    $region14: #{tpu_custom_call.1} parent=1 // pred_check
      _
    $region15: #{tpu_custom_call.1} parent=1 // pred_check_branch
      %330 = sbr.rel (0) target = $region17
    $region16: #{tpu_custom_call.1} parent=1 // pred_region
      %s332 = ssub.s32 4096, 256
      %333 = vsyncadd [#allocation3], %s332
      %s334 = sshll.u32 [#allocation2], 4
      %s335 = int_to_ptr.vmem [resolvable:$true] %s334
      %340 = dma.vmem_to_hbm [thread:$0]  %s335, 256, %s3, [#allocation3], 128, 128, 8
    $region17: #{tpu_custom_call.1} parent=1 // pred_fallthru
      _
    // Predicated region
    $region18: #{tpu_custom_call.1} parent=1 // pred_check
      _
    $region19: #{tpu_custom_call.1} parent=1 // pred_check_branch
      %342 = sbr.rel (0) target = $region21
    $region20: #{tpu_custom_call.1} parent=1 // pred_region
      %343 = dma.done [#allocation3], 4096
    $region21: #{tpu_custom_call.1} parent=1 // pred_fallthru
      _
    %344 = vsyncpa [#allocation3], 1

</llo_original>
